<compile_context>
chip_gen: v7x
topology: tpu7x:2x2x1
jax: 0.10.0
libtpu: 0.0.40
codegen_flags: <defaults>
</compile_context>

<pallas_src>
import functools
import math

import jax
import jax.numpy as jnp
from jax.experimental import pallas as pl
from jax.experimental.pallas import tpu as pltpu


LANE = 128          # pad interior (hidden) feature dims to a multiple of this
                    # (consider 256 on v6e/v7x once hidden dims reach >=256)
SUBLANE = 8
MAX_M_TILE = 2048   # rows per grid step (f32 @ 128-wide activation ~= 1 MiB)
MIN_M_SPLIT = 1024  # split the batch into >=2 grid steps once M reaches this
                    # (keeps both v7x TensorCores busy; near no-op on v5e/v6e)


def _round_up(x, m):
    return ((x + m - 1) // m) * m


# -----------------------------------------------------------------------------
# Kernel: whole MLP per batch tile; intermediate activations stay on-chip.
# refs = (x_ref, w_0, b_0, w_1, b_1, ..., w_{L-1}, b_{L-1}, o_ref)
# -----------------------------------------------------------------------------
def _mlp_fused_kernel(*refs, n_layers: int, activate_final: bool):
    x_ref, o_ref = refs[0], refs[-1]
    x = x_ref[...]
    for i in range(n_layers):
        w = refs[1 + 2 * i][...]
        b = refs[2 + 2 * i][...]
        # MXU matmul with f32 accumulation; bias-add / ReLU stay in f32.
        x = jnp.dot(x.astype(w.dtype), w, preferred_element_type=jnp.float32)
        x = x + b.astype(jnp.float32)
        if (i != n_layers - 1) or activate_final:
            x = jnp.maximum(x, 0.0)
    o_ref[...] = x.astype(o_ref.dtype)


def _build_and_run(x, padded_params, out_dim, *, activate_final, tm, grid_m,
                   single_buffer_weights):
    M, K = x.shape
    n_layers = len(padded_params)
    flat_params = []
    for w, b in padded_params:
        flat_params += [w, b]

    weight_kwargs = (
        dict(pipeline_mode=pl.Buffered(1)) if single_buffer_weights else {}
    )
    in_specs = [pl.BlockSpec((tm, K), lambda i: (i, 0))]
    for a in flat_params:
        # Constant index_map -> block resident across all batch tiles.
        in_specs.append(pl.BlockSpec(a.shape, lambda i: (0, 0), **weight_kwargs))
    out_specs = pl.BlockSpec((tm, out_dim), lambda i: (i, 0))

    # VMEM budget: double-buffered x/out tiles, (single|double)-buffered
    # resident weights, ~2x the widest intermediate activation tile (f32).
    itemsize = x.dtype.itemsize
    param_bytes = sum(a.size * a.dtype.itemsize for a in flat_params)
    max_width = max(w.shape[1] for w, _ in padded_params)
    w_bufs = 1 if single_buffer_weights else 2
    vmem_needed = (
        w_bufs * param_bytes
        + 2 * tm * K * itemsize
        + 2 * tm * out_dim * itemsize
        + 2 * tm * max_width * 4
    )
    if vmem_needed > (48 << 20):
        # TODO(synk): add a K/N-tiled matmul fallback with a VMEM accumulator
        # when the all-weights-resident design exceeds v7x's 64 MiB VMEM.
        raise NotImplementedError(
            f"resident-weight MLP needs ~{vmem_needed >> 20} MiB VMEM; "
            "hidden dims this large need K/N tiling")
    vmem_limit = min(64 << 20, max(int(1.5 * vmem_needed), 16 << 20))

    flops = 2 * M * sum(w.shape[0] * w.shape[1] for w, _ in padded_params)
    bytes_accessed = x.size * itemsize + param_bytes + M * out_dim * itemsize

    return pl.pallas_call(
        functools.partial(_mlp_fused_kernel, n_layers=n_layers,
                          activate_final=activate_final),
        out_shape=jax.ShapeDtypeStruct((M, out_dim), x.dtype),
        grid=(grid_m,),
        in_specs=in_specs,
        out_specs=out_specs,
        compiler_params=pltpu.CompilerParams(
            dimension_semantics=("parallel",),   # dual-TC sharding on v7x
            vmem_limit_bytes=vmem_limit,
        ),
        cost_estimate=pl.CostEstimate(
            flops=flops, transcendentals=0, bytes_accessed=bytes_accessed),
    )(x, *flat_params)


def mlp_forward(x, padded_params, out_dim, *, activate_final: bool = False):
    """Fused MLP forward on `padded_params` from `pad_params()`.

    No host-side padding of x, no host-side slicing of the output."""
    M, K = x.shape
    assert padded_params[0][0].shape[0] == K, "layer-0 in_dim must match x"
    assert padded_params[-1][0].shape[1] == out_dim

    if M < MIN_M_SPLIT:
        tm = M                              # one block == full batch (always legal)
    else:
        # >=2 grid steps, tile a multiple of 8, capped so tiles fit VMEM.
        tm = min(MAX_M_TILE, _round_up(pl.cdiv(M, 2), SUBLANE))
    grid_m = pl.cdiv(M, tm)

    try:
        return _build_and_run(x, padded_params, out_dim,
                              activate_final=activate_final, tm=tm,
                              grid_m=grid_m, single_buffer_weights=True)
    except NotImplementedError:
        raise
    except Exception:
        # pl.Buffered(1) pipeline hint unsupported on this jax build: retry
        # with default double-buffering (identical results, more weight VMEM).
        return _build_and_run(x, padded_params, out_dim,
                              activate_final=activate_final, tm=tm,
                              grid_m=grid_m, single_buffer_weights=False)


# -----------------------------------------------------------------------------
# Parameter init (torch.nn.Linear default U(-1/sqrt(fan_in), +1/sqrt(fan_in))),
# stored as (in_dim, out_dim) == W.T of the PyTorch (out, in) weight.
# -----------------------------------------------------------------------------
def init_mlp_params(key, in_dim, out_dim, hidden_dim, n_layers, dtype=jnp.float32):
    dims = [in_dim] + [hidden_dim] * (n_layers - 1) + [out_dim]
    params = []
    for i in range(n_layers):
        fan_in, fan_out = dims[i], dims[i + 1]
        key, kw, kb = jax.random.split(key, 3)
        bound = 1.0 / math.sqrt(fan_in)
        w = jax.random.uniform(kw, (fan_in, fan_out), dtype, -bound, bound)
        b = jax.random.uniform(kb, (fan_out,), dtype, -bound, bound)
        params.append((w, b))
    return params


def pad_params(params, lane=LANE, weight_dtype=None):
    """Zero-pad only the interior (hidden) feature dims to `lane` multiples.

    Layer 0 keeps its real in_dim (matches the unpadded x) and the last layer
    keeps its real out_dim (unpadded output store).  Zero padding is preserved
    exactly through bias-add and ReLU, so valid columns are untouched.
    Biases are stored pre-reshaped as (1, N) in f32.  Pass
    weight_dtype=jnp.bfloat16 on v6e/v7x once hidden dims are MXU-sized."""
    n = len(params)
    padded = []
    for i, (w, b) in enumerate(params):
        k, m = w.shape
        kp = k if i == 0 else _round_up(k, lane)
        mp = m if i == n - 1 else _round_up(m, lane)
        wdt = w.dtype if weight_dtype is None else weight_dtype
        w_p = jnp.zeros((kp, mp), wdt).at[:k, :m].set(w.astype(wdt))
        b_p = jnp.zeros((1, mp), jnp.float32).at[0, :m].set(b.astype(jnp.float32))
        padded.append((w_p, b_p))
    return padded


# -----------------------------------------------------------------------------
# Pure-JAX reference (unpadded) for correctness checking.
# -----------------------------------------------------------------------------
def mlp_forward_ref(x, params, *, activate_final: bool = False):
    n = len(params)
    for i, (w, b) in enumerate(params):
        x = x @ w + b
        if (i != n - 1) or activate_final:
            x = jnp.maximum(x, 0.0)
    return x


if __name__ == "__main__":
    # MLP(in_dim=16, out_dim=8, hidden_dim=32, n_layers=3), batch=8
    batch, in_dim, hidden_dim, out_dim, n_layers = 8, 16, 32, 8, 3

    key = jax.random.PRNGKey(0)
    key, kx = jax.random.split(key)
    x = jax.random.normal(kx, (batch, in_dim), jnp.float32)

    params = init_mlp_params(key, in_dim, out_dim, hidden_dim, n_layers)
    padded_params = pad_params(params)

    # TODO(synk): training-mode Dropout (dropout_rate is not None) not
    # implemented; eval-mode dropout is identity and norm_layer is never used
    # in forward().
    out = mlp_forward(x, padded_params, out_dim, activate_final=False)
    out = jax.block_until_ready(out)

    ref = mlp_forward_ref(x, params, activate_final=False)
    assert out.shape == (batch, out_dim)
    assert jnp.allclose(out, ref, atol=1e-5, rtol=1e-5), (
        float(jnp.max(jnp.abs(out - ref))))

    print("KERNEL_OK")
</pallas_src>

<mosaic_0001>
module attributes {stable_mosaic.version = 11 : i64} {
  func.func @_mlp_fused_kernel(%arg0: i32, %arg1: memref<8x16xf32, #tpu.memory_space<vmem>>, %arg2: memref<16x128xf32, #tpu.memory_space<vmem>>, %arg3: memref<1x128xf32, #tpu.memory_space<vmem>>, %arg4: memref<128x128xf32, #tpu.memory_space<vmem>>, %arg5: memref<1x128xf32, #tpu.memory_space<vmem>>, %arg6: memref<128x8xf32, #tpu.memory_space<vmem>>, %arg7: memref<1x8xf32, #tpu.memory_space<vmem>>, %arg8: memref<8x8xf32, #tpu.memory_space<vmem>>) attributes {dimension_semantics = [#tpu.dimension_semantics<parallel>], iteration_bounds = array<i64: 1>, scalar_prefetch = 0 : i64, scratch_operands = 0 : i64, tpu.core_type = #tpu.core_type<tc>, window_params = [{transform_indices = @transform_0, window_bounds = array<i64: 8, 16>}, {pipeline_mode = #tpu.pipeline_mode<synchronous>, transform_indices = @transform_1, window_bounds = array<i64: 16, 128>}, {pipeline_mode = #tpu.pipeline_mode<synchronous>, transform_indices = @transform_2, window_bounds = array<i64: 1, 128>}, {pipeline_mode = #tpu.pipeline_mode<synchronous>, transform_indices = @transform_3, window_bounds = array<i64: 128, 128>}, {pipeline_mode = #tpu.pipeline_mode<synchronous>, transform_indices = @transform_4, window_bounds = array<i64: 1, 128>}, {pipeline_mode = #tpu.pipeline_mode<synchronous>, transform_indices = @transform_5, window_bounds = array<i64: 128, 8>}, {pipeline_mode = #tpu.pipeline_mode<synchronous>, transform_indices = @transform_6, window_bounds = array<i64: 1, 8>}, {transform_indices = @transform_7, window_bounds = array<i64: 8, 8>}]} {
    %c0 = arith.constant 0 : index
    %c0_0 = arith.constant 0 : index
    %0 = vector.load %arg1[%c0, %c0_0] : memref<8x16xf32, #tpu.memory_space<vmem>>, vector<8x16xf32>
    %c0_1 = arith.constant 0 : index
    %c0_2 = arith.constant 0 : index
    %1 = vector.load %arg2[%c0_1, %c0_2] : memref<16x128xf32, #tpu.memory_space<vmem>>, vector<16x128xf32>
    %c0_3 = arith.constant 0 : index
    %c0_4 = arith.constant 0 : index
    %2 = vector.load %arg3[%c0_3, %c0_4] : memref<1x128xf32, #tpu.memory_space<vmem>>, vector<1x128xf32>
    %cst = arith.constant dense<0.000000e+00> : vector<8x128xf32>
    %3 = tpu.matmul %0, %1, %cst {dimension_numbers = #tpu.dot_dimension_numbers<[1], [0], [0], [1], [0, 0, 1, 1], [], []>} : vector<8x16xf32>, vector<16x128xf32>, vector<8x128xf32> -> vector<8x128xf32>
    %4 = vector.broadcast %2 : vector<1x128xf32> to vector<8x128xf32>
    %5 = arith.addf %3, %4 : vector<8x128xf32>
    %cst_5 = arith.constant 0.000000e+00 : f32
    %6 = vector.broadcast %cst_5 : f32 to vector<8x128xf32>
    %7 = arith.maximumf %5, %6 : vector<8x128xf32>
    %c0_6 = arith.constant 0 : index
    %c0_7 = arith.constant 0 : index
    %8 = vector.load %arg4[%c0_6, %c0_7] : memref<128x128xf32, #tpu.memory_space<vmem>>, vector<128x128xf32>
    %c0_8 = arith.constant 0 : index
    %c0_9 = arith.constant 0 : index
    %9 = vector.load %arg5[%c0_8, %c0_9] : memref<1x128xf32, #tpu.memory_space<vmem>>, vector<1x128xf32>
    %cst_10 = arith.constant dense<0.000000e+00> : vector<8x128xf32>
    %10 = tpu.matmul %7, %8, %cst_10 {dimension_numbers = #tpu.dot_dimension_numbers<[1], [0], [0], [1], [0, 0, 1, 1], [], []>} : vector<8x128xf32>, vector<128x128xf32>, vector<8x128xf32> -> vector<8x128xf32>
    %11 = vector.broadcast %9 : vector<1x128xf32> to vector<8x128xf32>
    %12 = arith.addf %10, %11 : vector<8x128xf32>
    %cst_11 = arith.constant 0.000000e+00 : f32
    %13 = vector.broadcast %cst_11 : f32 to vector<8x128xf32>
    %14 = arith.maximumf %12, %13 : vector<8x128xf32>
    %c0_12 = arith.constant 0 : index
    %c0_13 = arith.constant 0 : index
    %15 = vector.load %arg6[%c0_12, %c0_13] : memref<128x8xf32, #tpu.memory_space<vmem>>, vector<128x8xf32>
    %c0_14 = arith.constant 0 : index
    %c0_15 = arith.constant 0 : index
    %16 = vector.load %arg7[%c0_14, %c0_15] : memref<1x8xf32, #tpu.memory_space<vmem>>, vector<1x8xf32>
    %cst_16 = arith.constant dense<0.000000e+00> : vector<8x8xf32>
    %17 = tpu.matmul %14, %15, %cst_16 {dimension_numbers = #tpu.dot_dimension_numbers<[1], [0], [0], [1], [0, 0, 1, 1], [], []>} : vector<8x128xf32>, vector<128x8xf32>, vector<8x8xf32> -> vector<8x8xf32>
    %18 = vector.broadcast %16 : vector<1x8xf32> to vector<8x8xf32>
    %19 = arith.addf %17, %18 : vector<8x8xf32>
    %c0_17 = arith.constant 0 : index
    %c0_18 = arith.constant 0 : index
    %20 = vector.load %arg8[%c0_17, %c0_18] : memref<8x8xf32, #tpu.memory_space<vmem>>, vector<8x8xf32>
    tpu.vector_store %arg8[%c0_17, %c0_18], %19 {strides = array<i32>} : memref<8x8xf32, #tpu.memory_space<vmem>>, vector<8x8xf32>,
    return
  }
  func.func @transform_0(%arg0: i32) -> (i32, i32) {
    %c0_i32 = arith.constant 0 : i32
    %c0_i32_0 = arith.constant 0 : i32
    return %arg0, %c0_i32 : i32, i32
  }
  func.func @transform_1(%arg0: i32) -> (i32, i32) {
    %c0_i32 = arith.constant 0 : i32
    %c0_i32_0 = arith.constant 0 : i32
    %c0_i32_1 = arith.constant 0 : i32
    return %c0_i32, %c0_i32_0 : i32, i32
  }
  func.func @transform_2(%arg0: i32) -> (i32, i32) {
    %c0_i32 = arith.constant 0 : i32
    %c0_i32_0 = arith.constant 0 : i32
    %c0_i32_1 = arith.constant 0 : i32
    return %c0_i32, %c0_i32_0 : i32, i32
  }
  func.func @transform_3(%arg0: i32) -> (i32, i32) {
    %c0_i32 = arith.constant 0 : i32
    %c0_i32_0 = arith.constant 0 : i32
    %c0_i32_1 = arith.constant 0 : i32
    return %c0_i32, %c0_i32_0 : i32, i32
  }
  func.func @transform_4(%arg0: i32) -> (i32, i32) {
    %c0_i32 = arith.constant 0 : i32
    %c0_i32_0 = arith.constant 0 : i32
    %c0_i32_1 = arith.constant 0 : i32
    return %c0_i32, %c0_i32_0 : i32, i32
  }
  func.func @transform_5(%arg0: i32) -> (i32, i32) {
    %c0_i32 = arith.constant 0 : i32
    %c0_i32_0 = arith.constant 0 : i32
    %c0_i32_1 = arith.constant 0 : i32
    return %c0_i32, %c0_i32_0 : i32, i32
  }
  func.func @transform_6(%arg0: i32) -> (i32, i32) {
    %c0_i32 = arith.constant 0 : i32
    %c0_i32_0 = arith.constant 0 : i32
    %c0_i32_1 = arith.constant 0 : i32
    return %c0_i32, %c0_i32_0 : i32, i32
  }
  func.func @transform_7(%arg0: i32) -> (i32, i32) {
    %c0_i32 = arith.constant 0 : i32
    %c0_i32_0 = arith.constant 0 : i32
    return %arg0, %c0_i32 : i32, i32
  }
}

module attributes {stable_mosaic.version = 11 : i64} {
  func.func @_mlp_fused_kernel(%arg0: i32, %arg1: memref<8x16xf32, #tpu.memory_space<vmem>>, %arg2: memref<16x128xf32, #tpu.memory_space<vmem>>, %arg3: memref<1x128xf32, #tpu.memory_space<vmem>>, %arg4: memref<128x128xf32, #tpu.memory_space<vmem>>, %arg5: memref<1x128xf32, #tpu.memory_space<vmem>>, %arg6: memref<128x8xf32, #tpu.memory_space<vmem>>, %arg7: memref<1x8xf32, #tpu.memory_space<vmem>>, %arg8: memref<8x8xf32, #tpu.memory_space<vmem>>) attributes {dimension_semantics = [#tpu.dimension_semantics<parallel>], iteration_bounds = array<i64: 1>, scalar_prefetch = 0 : i64, scratch_operands = 0 : i64, tpu.core_type = #tpu.core_type<tc>, window_params = [{transform_indices = @transform_0, window_bounds = array<i64: 8, 16>}, {pipeline_mode = #tpu.pipeline_mode<synchronous>, transform_indices = @transform_1, window_bounds = array<i64: 16, 128>}, {pipeline_mode = #tpu.pipeline_mode<synchronous>, transform_indices = @transform_2, window_bounds = array<i64: 1, 128>}, {pipeline_mode = #tpu.pipeline_mode<synchronous>, transform_indices = @transform_3, window_bounds = array<i64: 128, 128>}, {pipeline_mode = #tpu.pipeline_mode<synchronous>, transform_indices = @transform_4, window_bounds = array<i64: 1, 128>}, {pipeline_mode = #tpu.pipeline_mode<synchronous>, transform_indices = @transform_5, window_bounds = array<i64: 128, 8>}, {pipeline_mode = #tpu.pipeline_mode<synchronous>, transform_indices = @transform_6, window_bounds = array<i64: 1, 8>}, {transform_indices = @transform_7, window_bounds = array<i64: 8, 8>}]} {
    %c0 = arith.constant 0 : index
    %c0_0 = arith.constant 0 : index
    %0 = vector.load %arg1[%c0, %c0_0] : memref<8x16xf32, #tpu.memory_space<vmem>>, vector<8x16xf32>
    %c0_1 = arith.constant 0 : index
    %c0_2 = arith.constant 0 : index
    %1 = vector.load %arg2[%c0_1, %c0_2] : memref<16x128xf32, #tpu.memory_space<vmem>>, vector<16x128xf32>
    %c0_3 = arith.constant 0 : index
    %c0_4 = arith.constant 0 : index
    %2 = vector.load %arg3[%c0_3, %c0_4] : memref<1x128xf32, #tpu.memory_space<vmem>>, vector<1x128xf32>
    %cst = arith.constant dense<0.000000e+00> : vector<8x128xf32>
    %3 = tpu.matmul %0, %1, %cst {dimension_numbers = #tpu.dot_dimension_numbers<[1], [0], [0], [1], [0, 0, 1, 1], [], []>} : vector<8x16xf32>, vector<16x128xf32>, vector<8x128xf32> -> vector<8x128xf32>
    %4 = vector.broadcast %2 : vector<1x128xf32> to vector<8x128xf32>
    %5 = arith.addf %3, %4 : vector<8x128xf32>
    %cst_5 = arith.constant 0.000000e+00 : f32
    %6 = vector.broadcast %cst_5 : f32 to vector<8x128xf32>
    %7 = arith.maximumf %5, %6 : vector<8x128xf32>
    %c0_6 = arith.constant 0 : index
    %c0_7 = arith.constant 0 : index
    %8 = vector.load %arg4[%c0_6, %c0_7] : memref<128x128xf32, #tpu.memory_space<vmem>>, vector<128x128xf32>
    %c0_8 = arith.constant 0 : index
    %c0_9 = arith.constant 0 : index
    %9 = vector.load %arg5[%c0_8, %c0_9] : memref<1x128xf32, #tpu.memory_space<vmem>>, vector<1x128xf32>
    %cst_10 = arith.constant dense<0.000000e+00> : vector<8x128xf32>
    %10 = tpu.matmul %7, %8, %cst_10 {dimension_numbers = #tpu.dot_dimension_numbers<[1], [0], [0], [1], [0, 0, 1, 1], [], []>} : vector<8x128xf32>, vector<128x128xf32>, vector<8x128xf32> -> vector<8x128xf32>
    %11 = vector.broadcast %9 : vector<1x128xf32> to vector<8x128xf32>
    %12 = arith.addf %10, %11 : vector<8x128xf32>
    %cst_11 = arith.constant 0.000000e+00 : f32
    %13 = vector.broadcast %cst_11 : f32 to vector<8x128xf32>
    %14 = arith.maximumf %12, %13 : vector<8x128xf32>
    %c0_12 = arith.constant 0 : index
    %c0_13 = arith.constant 0 : index
    %15 = vector.load %arg6[%c0_12, %c0_13] : memref<128x8xf32, #tpu.memory_space<vmem>>, vector<128x8xf32>
    %c0_14 = arith.constant 0 : index
    %c0_15 = arith.constant 0 : index
    %16 = vector.load %arg7[%c0_14, %c0_15] : memref<1x8xf32, #tpu.memory_space<vmem>>, vector<1x8xf32>
    %cst_16 = arith.constant dense<0.000000e+00> : vector<8x8xf32>
    %17 = tpu.matmul %14, %15, %cst_16 {dimension_numbers = #tpu.dot_dimension_numbers<[1], [0], [0], [1], [0, 0, 1, 1], [], []>} : vector<8x128xf32>, vector<128x8xf32>, vector<8x8xf32> -> vector<8x8xf32>
    %18 = vector.broadcast %16 : vector<1x8xf32> to vector<8x8xf32>
    %19 = arith.addf %17, %18 : vector<8x8xf32>
    %c0_17 = arith.constant 0 : index
    %c0_18 = arith.constant 0 : index
    %20 = vector.load %arg8[%c0_17, %c0_18] : memref<8x8xf32, #tpu.memory_space<vmem>>, vector<8x8xf32>
    tpu.vector_store %arg8[%c0_17, %c0_18], %19 {strides = array<i32>} : memref<8x8xf32, #tpu.memory_space<vmem>>, vector<8x8xf32>,
    return
  }
  func.func @transform_0(%arg0: i32) -> (i32, i32) {
    %c0_i32 = arith.constant 0 : i32
    %c0_i32_0 = arith.constant 0 : i32
    return %arg0, %c0_i32 : i32, i32
  }
  func.func @transform_1(%arg0: i32) -> (i32, i32) {
    %c0_i32 = arith.constant 0 : i32
    %c0_i32_0 = arith.constant 0 : i32
    %c0_i32_1 = arith.constant 0 : i32
    return %c0_i32, %c0_i32_0 : i32, i32
  }
  func.func @transform_2(%arg0: i32) -> (i32, i32) {
    %c0_i32 = arith.constant 0 : i32
    %c0_i32_0 = arith.constant 0 : i32
    %c0_i32_1 = arith.constant 0 : i32
    return %c0_i32, %c0_i32_0 : i32, i32
  }
  func.func @transform_3(%arg0: i32) -> (i32, i32) {
    %c0_i32 = arith.constant 0 : i32
    %c0_i32_0 = arith.constant 0 : i32
    %c0_i32_1 = arith.constant 0 : i32
    return %c0_i32, %c0_i32_0 : i32, i32
  }
  func.func @transform_4(%arg0: i32) -> (i32, i32) {
    %c0_i32 = arith.constant 0 : i32
    %c0_i32_0 = arith.constant 0 : i32
    %c0_i32_1 = arith.constant 0 : i32
    return %c0_i32, %c0_i32_0 : i32, i32
  }
  func.func @transform_5(%arg0: i32) -> (i32, i32) {
    %c0_i32 = arith.constant 0 : i32
    %c0_i32_0 = arith.constant 0 : i32
    %c0_i32_1 = arith.constant 0 : i32
    return %c0_i32, %c0_i32_0 : i32, i32
  }
  func.func @transform_6(%arg0: i32) -> (i32, i32) {
    %c0_i32 = arith.constant 0 : i32
    %c0_i32_0 = arith.constant 0 : i32
    %c0_i32_1 = arith.constant 0 : i32
    return %c0_i32, %c0_i32_0 : i32, i32
  }
  func.func @transform_7(%arg0: i32) -> (i32, i32) {
    %c0_i32 = arith.constant 0 : i32
    %c0_i32_0 = arith.constant 0 : i32
    return %arg0, %c0_i32 : i32, i32
  }
}

</mosaic_0001>

<llo_original>
// kernel: tpu_custom_call.1
$region0: #{tpu_custom_call.1}
  #allocation0 [shape = 'u32[]', space=smem, size = 0x4, offset = 0x4, fixed_abs, tag = 'smem constant byte address 0x4 - core index']
  #allocation1 [shape = 'u32[144,128]{1,0:T(1,128)}', space=vmem, size = 0x12000, scoped, tag = 'internal scratch']
  %s0 = inlined_call_operand.hbm [shape: f32[8,16], index: 0, kind: input, shape index: {}]
  %s1 = inlined_call_operand.vmem [shape: f32[16,128], index: 1, kind: input, shape index: {}]
  %s2 = inlined_call_operand.vmem [shape: f32[1,128], index: 2, kind: input, shape index: {}]
  %s3 = inlined_call_operand.vmem [shape: f32[128,128], index: 3, kind: input, shape index: {}]
  %s4 = inlined_call_operand.vmem [shape: f32[1,128], index: 4, kind: input, shape index: {}]
  %s5 = inlined_call_operand.vmem [shape: f32[128,8], index: 5, kind: input, shape index: {}]
  %s6 = inlined_call_operand.vmem [shape: f32[1,8], index: 6, kind: input, shape index: {}]
  %s7 = inlined_call_operand.hbm [shape: f32[8,8], index: 7, kind: output, shape index: {}]
  %s8 = sld [smem:[#allocation0]]
  $region42: #{tpu_custom_call.1} parent=0
    _
  %s10 = ssub.s32 1, %s8
  %s11 = scalar_select 0, %s10, %s8
  $region1: #{tpu_custom_call.1} parent=0
    #allocation2 [shape = 'u8[4096]{0}', space=vmem, size = 0x1000, scoped, tag = 'input window, operand 0, single buffered']
    #allocation3 [shape = 's32[1]{0}', space=sflag, size = 0x4, scoped, tag = 'scoped memory for tpu_custom_call.1']
    #allocation4 [shape = 's32[1]{0}', space=sflag, size = 0x4, scoped, tag = 'scoped memory for tpu_custom_call.1']
    #allocation5 [shape = 'u8[4096]{0}', space=vmem, size = 0x1000, scoped, tag = 'output window, operand 0, single buffered']
    %12 = vsyncpa [#allocation3], 0
    %13 = vsyncpa [#allocation4], 0
    // Predicated region
    $region2: #{tpu_custom_call.1} parent=1 // pred_check
      _
    $region3: #{tpu_custom_call.1} parent=1 // pred_check_branch
      %15 = sbr.rel (0) target = $region5
    $region4: #{tpu_custom_call.1} parent=1 // pred_region
      %s17 = ssub.s32 128, 128
      %18 = vsyncadd [#allocation3], %s17
      %s20 = sshll.u32 [#allocation2], 4
      %s21 = int_to_ptr.vmem [resolvable:$true] %s20
      %23 = dma.hbm_to_vmem [thread:$0]  %s0, 128, %s21, [#allocation3]
    $region5: #{tpu_custom_call.1} parent=1 // pred_fallthru
      _
    // Predicated region
    $region6: #{tpu_custom_call.1} parent=1 // pred_check
      _
    $region7: #{tpu_custom_call.1} parent=1 // pred_check_branch
      %25 = sbr.rel (0) target = $region9
    $region8: #{tpu_custom_call.1} parent=1 // pred_region
      _
    $region9: #{tpu_custom_call.1} parent=1 // pred_fallthru
      _
    // Predicated region
    $region10: #{tpu_custom_call.1} parent=1 // pred_check
      _
    $region11: #{tpu_custom_call.1} parent=1 // pred_check_branch
      %27 = sbr.rel (0) target = $region13
    $region12: #{tpu_custom_call.1} parent=1 // pred_region
      _
    $region13: #{tpu_custom_call.1} parent=1 // pred_fallthru
      _
    // Predicated region
    $region14: #{tpu_custom_call.1} parent=1 // pred_check
      _
    $region15: #{tpu_custom_call.1} parent=1 // pred_check_branch
      %29 = sbr.rel (0) target = $region17
    $region16: #{tpu_custom_call.1} parent=1 // pred_region
      _
    $region17: #{tpu_custom_call.1} parent=1 // pred_fallthru
      _
    // Predicated region
    $region18: #{tpu_custom_call.1} parent=1 // pred_check
      _
    $region19: #{tpu_custom_call.1} parent=1 // pred_check_branch
      %31 = sbr.rel (0) target = $region21
    $region20: #{tpu_custom_call.1} parent=1 // pred_region
      _
    $region21: #{tpu_custom_call.1} parent=1 // pred_fallthru
      _
    // Predicated region
    $region22: #{tpu_custom_call.1} parent=1 // pred_check
      _
    $region23: #{tpu_custom_call.1} parent=1 // pred_check_branch
      %33 = sbr.rel (0) target = $region25
    $region24: #{tpu_custom_call.1} parent=1 // pred_region
      _
    $region25: #{tpu_custom_call.1} parent=1 // pred_fallthru
      _
    // Predicated region
    $region26: #{tpu_custom_call.1} parent=1 // pred_check
      _
    $region27: #{tpu_custom_call.1} parent=1 // pred_check_branch
      %35 = sbr.rel (0) target = $region29
    $region28: #{tpu_custom_call.1} parent=1 // pred_region
      _
    $region29: #{tpu_custom_call.1} parent=1 // pred_fallthru
      _
    // Predicated region
    $region30: #{tpu_custom_call.1} parent=1 // pred_check
      _
    $region31: #{tpu_custom_call.1} parent=1 // pred_check_branch
      %37 = sbr.rel (0) target = $region33
    $region32: #{tpu_custom_call.1} parent=1 // pred_region
      %38 = dma.done [#allocation3], 128
    $region33: #{tpu_custom_call.1} parent=1 // pred_fallthru
      _
    %v39 = vld [vmem:[#allocation2] sm:$0xff]
    %v40 = vld [vmem:[%s1] sm:$0xff]
    %v41 = vld [vmem:[%s1 + $0x8] sm:$0xff]
    %v42 = vld [vmem:[%s2] sm:$0x1]
    %v44 = vlaneseq
    %v45 = vshrl.u32 %v44, 7
    %v46 = vsub.s32 0, %v45
    %v47 = vrot.slane %v42, %v46
    %vm49 = vcmask 130048
    %v51 = vsel %vm49, %v39, 0
    %53 = vmatprep.subr.mxu0 0.0
    %54 = vmatpush1.msra.mxu0 %v40
    %55 = vmatprep.subr.mxu0 0.0
    %56 = vmatpush1.msra.mxu0 %v41
    %57 = vmatprep.subr.mxu0 0.0
    %58 = vmatpush1.msra.mxu0 0.0
    %59 = vmatprep.subr.mxu0 0.0
    %60 = vmatpush1.msra.mxu0 0.0
    %61 = vmatprep.subr.mxu0 0.0
    %62 = vmatpush1.msra.mxu0 0.0
    %63 = vmatprep.subr.mxu0 0.0
    %64 = vmatpush1.msra.mxu0 0.0
    %65 = vmatprep.subr.mxu0 0.0
    %66 = vmatpush1.msra.mxu0 0.0
    %67 = vmatprep.subr.mxu0 0.0
    %68 = vmatpush1.msra.mxu0 0.0
    %69 = vmatprep.subr.mxu0 0.0
    %70 = vmatpush1.msra.mxu0 0.0
    %71 = vmatprep.subr.mxu0 0.0
    %72 = vmatpush1.msra.mxu0 0.0
    %73 = vmatprep.subr.mxu0 0.0
    %74 = vmatpush1.msra.mxu0 0.0
    %75 = vmatprep.subr.mxu0 0.0
    %76 = vmatpush1.msra.mxu0 0.0
    %77 = vmatprep.subr.mxu0 0.0
    %78 = vmatpush1.msra.mxu0 0.0
    %79 = vmatprep.subr.mxu0 0.0
    %80 = vmatpush1.msra.mxu0 0.0
    %81 = vmatprep.subr.mxu0 0.0
    %82 = vmatpush1.msra.mxu0 0.0
    %83 = vmatprep.subr.mxu0 0.0
    %84 = vmatpush1.msra.mxu0 0.0
    %85 = vmatprep.subr.mxu0 0.0
    %86 = vmatpush1.msra.mxu0 0.0
    %87 = vmatprep.subr.mxu0 0.0
    %88 = vmatpush1.msra.mxu0 0.0
    %89 = vmatprep.subr.mxu0 0.0
    %90 = vmatpush1.msra.mxu0 0.0
    %91 = vmatprep.subr.mxu0 0.0
    %92 = vmatpush1.msra.mxu0 0.0
    %93 = vmatprep.subr.mxu0 0.0
    %94 = vmatpush1.msra.mxu0 0.0
    %95 = vmatprep.subr.mxu0 0.0
    %96 = vmatpush1.msra.mxu0 0.0
    %97 = vmatprep.subr.mxu0 0.0
    %98 = vmatpush1.msra.mxu0 0.0
    %99 = vmatprep.subr.mxu0 0.0
    %100 = vmatpush1.msra.mxu0 0.0
    %101 = vmatprep.subr.mxu0 0.0
    %102 = vmatpush1.msra.mxu0 0.0
    %103 = vmatprep.subr.mxu0 0.0
    %104 = vmatpush1.msra.mxu0 0.0
    %105 = vmatprep.subr.mxu0 0.0
    %106 = vmatpush1.msra.mxu0 0.0
    %107 = vmatprep.subr.mxu0 0.0
    %108 = vmatpush1.msra.mxu0 0.0
    %109 = vmatprep.subr.mxu0 0.0
    %110 = vmatpush1.msra.mxu0 0.0
    %111 = vmatprep.subr.mxu0 0.0
    %112 = vmatpush1.msra.mxu0 0.0
    %113 = vmatprep.subr.mxu0 0.0
    %114 = vmatpush1.msra.mxu0 0.0
    %115 = vmatprep.subr.mxu0 0.0
    %116 = vmatpush1.msra.mxu0 0.0
    %117 = vmatprep.mubr.f32.mxu0 0.0
    %118 = vmatmul.mubr.f32.gmra.mrb[0].mxu0 %v51
    %v119 = vpop.f32.mrb[0].mxu0
    %v120 = vadd.f32 %v47, %v119
    %v121 = vpop.f32.mrb[0].mxu0
    %122 = vdwg.mxu0
    %v123 = vmax.f32 %v120, 0.0
    %v124 = vld [vmem:[%s3] sm:$0xff]
    %v125 = vld [vmem:[%s3 + $0x8] sm:$0xff]
    %v126 = vld [vmem:[%s3 + $0x10] sm:$0xff]
    %v127 = vld [vmem:[%s3 + $0x18] sm:$0xff]
    %v128 = vld [vmem:[%s3 + $0x20] sm:$0xff]
    %v129 = vld [vmem:[%s3 + $0x28] sm:$0xff]
    %v130 = vld [vmem:[%s3 + $0x30] sm:$0xff]
    %v131 = vld [vmem:[%s3 + $0x38] sm:$0xff]
    %v132 = vld [vmem:[%s3 + $0x40] sm:$0xff]
    %v133 = vld [vmem:[%s3 + $0x48] sm:$0xff]
    %v134 = vld [vmem:[%s3 + $0x50] sm:$0xff]
    %v135 = vld [vmem:[%s3 + $0x58] sm:$0xff]
    %v136 = vld [vmem:[%s3 + $0x60] sm:$0xff]
    %v137 = vld [vmem:[%s3 + $0x68] sm:$0xff]
    %v138 = vld [vmem:[%s3 + $0x70] sm:$0xff]
    %v139 = vld [vmem:[%s3 + $0x78] sm:$0xff]
    %v140 = vld [vmem:[%s4] sm:$0x1]
    %v142 = vlaneseq
    %v143 = vshrl.u32 %v142, 7
    %v144 = vsub.s32 0, %v143
    %v145 = vrot.slane %v140, %v144
    %147 = vmatprep.subr.mxu0 0.0
    %148 = vmatpush1.msra.mxu0 %v124
    %149 = vmatprep.subr.mxu0 0.0
    %150 = vmatpush1.msra.mxu0 %v125
    %151 = vmatprep.subr.mxu0 0.0
    %152 = vmatpush1.msra.mxu0 %v126
    %153 = vmatprep.subr.mxu0 0.0
    %154 = vmatpush1.msra.mxu0 %v127
    %155 = vmatprep.subr.mxu0 0.0
    %156 = vmatpush1.msra.mxu0 %v128
    %157 = vmatprep.subr.mxu0 0.0
    %158 = vmatpush1.msra.mxu0 %v129
    %159 = vmatprep.subr.mxu0 0.0
    %160 = vmatpush1.msra.mxu0 %v130
    %161 = vmatprep.subr.mxu0 0.0
    %162 = vmatpush1.msra.mxu0 %v131
    %163 = vmatprep.subr.mxu0 0.0
    %164 = vmatpush1.msra.mxu0 %v132
    %165 = vmatprep.subr.mxu0 0.0
    %166 = vmatpush1.msra.mxu0 %v133
    %167 = vmatprep.subr.mxu0 0.0
    %168 = vmatpush1.msra.mxu0 %v134
    %169 = vmatprep.subr.mxu0 0.0
    %170 = vmatpush1.msra.mxu0 %v135
    %171 = vmatprep.subr.mxu0 0.0
    %172 = vmatpush1.msra.mxu0 %v136
    %173 = vmatprep.subr.mxu0 0.0
    %174 = vmatpush1.msra.mxu0 %v137
    %175 = vmatprep.subr.mxu0 0.0
    %176 = vmatpush1.msra.mxu0 %v138
    %177 = vmatprep.subr.mxu0 0.0
    %178 = vmatpush1.msra.mxu0 %v139
    %179 = vmatprep.subr.mxu0 0.0
    %180 = vmatpush1.msra.mxu0 0.0
    %181 = vmatprep.subr.mxu0 0.0
    %182 = vmatpush1.msra.mxu0 0.0
    %183 = vmatprep.subr.mxu0 0.0
    %184 = vmatpush1.msra.mxu0 0.0
    %185 = vmatprep.subr.mxu0 0.0
    %186 = vmatpush1.msra.mxu0 0.0
    %187 = vmatprep.subr.mxu0 0.0
    %188 = vmatpush1.msra.mxu0 0.0
    %189 = vmatprep.subr.mxu0 0.0
    %190 = vmatpush1.msra.mxu0 0.0
    %191 = vmatprep.subr.mxu0 0.0
    %192 = vmatpush1.msra.mxu0 0.0
    %193 = vmatprep.subr.mxu0 0.0
    %194 = vmatpush1.msra.mxu0 0.0
    %195 = vmatprep.subr.mxu0 0.0
    %196 = vmatpush1.msra.mxu0 0.0
    %197 = vmatprep.subr.mxu0 0.0
    %198 = vmatpush1.msra.mxu0 0.0
    %199 = vmatprep.subr.mxu0 0.0
    %200 = vmatpush1.msra.mxu0 0.0
    %201 = vmatprep.subr.mxu0 0.0
    %202 = vmatpush1.msra.mxu0 0.0
    %203 = vmatprep.subr.mxu0 0.0
    %204 = vmatpush1.msra.mxu0 0.0
    %205 = vmatprep.subr.mxu0 0.0
    %206 = vmatpush1.msra.mxu0 0.0
    %207 = vmatprep.subr.mxu0 0.0
    %208 = vmatpush1.msra.mxu0 0.0
    %209 = vmatprep.subr.mxu0 0.0
    %210 = vmatpush1.msra.mxu0 0.0
    %211 = vmatprep.mubr.f32.mxu0 0.0
    %212 = vmatmul.mubr.f32.gmra.mrb[0].mxu0 %v123
    %v213 = vpop.f32.mrb[0].mxu0
    %v214 = vadd.f32 %v145, %v213
    %v215 = vpop.f32.mrb[0].mxu0
    %216 = vdwg.mxu0
    %v217 = vmax.f32 %v214, 0.0
    %v218 = vld [vmem:[%s5] sm:$0xff]
    %v219 = vld [vmem:[%s5 + $0x8] sm:$0xff]
    %v220 = vld [vmem:[%s5 + $0x10] sm:$0xff]
    %v221 = vld [vmem:[%s5 + $0x18] sm:$0xff]
    %v222 = vld [vmem:[%s5 + $0x20] sm:$0xff]
    %v223 = vld [vmem:[%s5 + $0x28] sm:$0xff]
    %v224 = vld [vmem:[%s5 + $0x30] sm:$0xff]
    %v225 = vld [vmem:[%s5 + $0x38] sm:$0xff]
    %v226 = vld [vmem:[%s5 + $0x40] sm:$0xff]
    %v227 = vld [vmem:[%s5 + $0x48] sm:$0xff]
    %v228 = vld [vmem:[%s5 + $0x50] sm:$0xff]
    %v229 = vld [vmem:[%s5 + $0x58] sm:$0xff]
    %v230 = vld [vmem:[%s5 + $0x60] sm:$0xff]
    %v231 = vld [vmem:[%s5 + $0x68] sm:$0xff]
    %v232 = vld [vmem:[%s5 + $0x70] sm:$0xff]
    %v233 = vld [vmem:[%s5 + $0x78] sm:$0xff]
    %v234 = vld [vmem:[%s6] sm:$0x1]
    %v236 = vlaneseq
    %v237 = vshrl.u32 %v236, 7
    %v238 = vsub.s32 0, %v237
    %v239 = vrot.slane %v234, %v238
    %241 = vmatprep.subr.mxu0 0.0
    %242 = vmatpush1.msra.mxu0 %v218
    %243 = vmatprep.subr.mxu0 0.0
    %244 = vmatpush1.msra.mxu0 %v219
    %245 = vmatprep.subr.mxu0 0.0
    %246 = vmatpush1.msra.mxu0 %v220
    %247 = vmatprep.subr.mxu0 0.0
    %248 = vmatpush1.msra.mxu0 %v221
    %249 = vmatprep.subr.mxu0 0.0
    %250 = vmatpush1.msra.mxu0 %v222
    %251 = vmatprep.subr.mxu0 0.0
    %252 = vmatpush1.msra.mxu0 %v223
    %253 = vmatprep.subr.mxu0 0.0
    %254 = vmatpush1.msra.mxu0 %v224
    %255 = vmatprep.subr.mxu0 0.0
    %256 = vmatpush1.msra.mxu0 %v225
    %257 = vmatprep.subr.mxu0 0.0
    %258 = vmatpush1.msra.mxu0 %v226
    %259 = vmatprep.subr.mxu0 0.0
    %260 = vmatpush1.msra.mxu0 %v227
    %261 = vmatprep.subr.mxu0 0.0
    %262 = vmatpush1.msra.mxu0 %v228
    %263 = vmatprep.subr.mxu0 0.0
    %264 = vmatpush1.msra.mxu0 %v229
    %265 = vmatprep.subr.mxu0 0.0
    %266 = vmatpush1.msra.mxu0 %v230
    %267 = vmatprep.subr.mxu0 0.0
    %268 = vmatpush1.msra.mxu0 %v231
    %269 = vmatprep.subr.mxu0 0.0
    %270 = vmatpush1.msra.mxu0 %v232
    %271 = vmatprep.subr.mxu0 0.0
    %272 = vmatpush1.msra.mxu0 %v233
    %273 = vmatprep.subr.mxu0 0.0
    %274 = vmatpush1.msra.mxu0 0.0
    %275 = vmatprep.subr.mxu0 0.0
    %276 = vmatpush1.msra.mxu0 0.0
    %277 = vmatprep.subr.mxu0 0.0
    %278 = vmatpush1.msra.mxu0 0.0
    %279 = vmatprep.subr.mxu0 0.0
    %280 = vmatpush1.msra.mxu0 0.0
    %281 = vmatprep.subr.mxu0 0.0
    %282 = vmatpush1.msra.mxu0 0.0
    %283 = vmatprep.subr.mxu0 0.0
    %284 = vmatpush1.msra.mxu0 0.0
    %285 = vmatprep.subr.mxu0 0.0
    %286 = vmatpush1.msra.mxu0 0.0
    %287 = vmatprep.subr.mxu0 0.0
    %288 = vmatpush1.msra.mxu0 0.0
    %289 = vmatprep.subr.mxu0 0.0
    %290 = vmatpush1.msra.mxu0 0.0
    %291 = vmatprep.subr.mxu0 0.0
    %292 = vmatpush1.msra.mxu0 0.0
    %293 = vmatprep.subr.mxu0 0.0
    %294 = vmatpush1.msra.mxu0 0.0
    %295 = vmatprep.subr.mxu0 0.0
    %296 = vmatpush1.msra.mxu0 0.0
    %297 = vmatprep.subr.mxu0 0.0
    %298 = vmatpush1.msra.mxu0 0.0
    %299 = vmatprep.subr.mxu0 0.0
    %300 = vmatpush1.msra.mxu0 0.0
    %301 = vmatprep.subr.mxu0 0.0
    %302 = vmatpush1.msra.mxu0 0.0
    %303 = vmatprep.subr.mxu0 0.0
    %304 = vmatpush1.msra.mxu0 0.0
    %305 = vmatprep.mubr.f32.mxu0 0.0
    %306 = vmatmul.mubr.f32.gmra.mrb[0].mxu0 %v217
    %v307 = vpop.f32.mrb[0].mxu0
    %v308 = vadd.f32 %v239, %v307
    %v309 = vpop.f32.mrb[0].mxu0
    %310 = vdwg.mxu0
    %vm311 = vcmask 64512
    %312 = vst.msk [vmem:[#allocation5] sm:$0xff] %vm311, %v308
    // Predicated region
    $region34: #{tpu_custom_call.1} parent=1 // pred_check
      _
    $region35: #{tpu_custom_call.1} parent=1 // pred_check_branch
      %314 = sbr.rel (0) target = $region37
    $region36: #{tpu_custom_call.1} parent=1 // pred_region
      %s316 = ssub.s32 128, 128
      %317 = vsyncadd [#allocation4], %s316
      %s319 = sshll.u32 [#allocation5], 4
      %s320 = int_to_ptr.vmem [resolvable:$true] %s319
      %322 = dma.vmem_to_hbm [thread:$0]  %s320, 128, %s7, [#allocation4]
    $region37: #{tpu_custom_call.1} parent=1 // pred_fallthru
      _
    // Predicated region
    $region38: #{tpu_custom_call.1} parent=1 // pred_check
      _
    $region39: #{tpu_custom_call.1} parent=1 // pred_check_branch
      %324 = sbr.rel (0) target = $region41
    $region40: #{tpu_custom_call.1} parent=1 // pred_region
      %325 = dma.done [#allocation4], 128
    $region41: #{tpu_custom_call.1} parent=1 // pred_fallthru
      _
    %326 = vsyncpa [#allocation3], 1
    %327 = vsyncpa [#allocation4], 1

// kernel: tpu_custom_call.1
$region0: #{tpu_custom_call.1}
  #allocation0 [shape = 'u32[]', space=smem, size = 0x4, offset = 0x4, fixed_abs, tag = 'smem constant byte address 0x4 - core index']
  #allocation1 [shape = 'u32[144,128]{1,0:T(1,128)}', space=vmem, size = 0x12000, scoped, tag = 'internal scratch']
  %s0 = inlined_call_operand.hbm [shape: f32[8,16], index: 0, kind: input, shape index: {}]
  %s1 = inlined_call_operand.vmem [shape: f32[16,128], index: 1, kind: input, shape index: {}]
  %s2 = inlined_call_operand.vmem [shape: f32[1,128], index: 2, kind: input, shape index: {}]
  %s3 = inlined_call_operand.vmem [shape: f32[128,128], index: 3, kind: input, shape index: {}]
  %s4 = inlined_call_operand.vmem [shape: f32[1,128], index: 4, kind: input, shape index: {}]
  %s5 = inlined_call_operand.vmem [shape: f32[128,8], index: 5, kind: input, shape index: {}]
  %s6 = inlined_call_operand.vmem [shape: f32[1,8], index: 6, kind: input, shape index: {}]
  %s7 = inlined_call_operand.hbm [shape: f32[8,8], index: 7, kind: output, shape index: {}]
  %s8 = sld [smem:[#allocation0]]
  $region42: #{tpu_custom_call.1} parent=0
    _
  %s10 = ssub.s32 1, %s8
  %s11 = scalar_select 0, %s10, %s8
  $region1: #{tpu_custom_call.1} parent=0
    #allocation2 [shape = 'u8[4096]{0}', space=vmem, size = 0x1000, scoped, tag = 'input window, operand 0, single buffered']
    #allocation3 [shape = 's32[1]{0}', space=sflag, size = 0x4, scoped, tag = 'scoped memory for tpu_custom_call.1']
    #allocation4 [shape = 's32[1]{0}', space=sflag, size = 0x4, scoped, tag = 'scoped memory for tpu_custom_call.1']
    #allocation5 [shape = 'u8[4096]{0}', space=vmem, size = 0x1000, scoped, tag = 'output window, operand 0, single buffered']
    %12 = vsyncpa [#allocation3], 0
    %13 = vsyncpa [#allocation4], 0
    // Predicated region
    $region2: #{tpu_custom_call.1} parent=1 // pred_check
      _
    $region3: #{tpu_custom_call.1} parent=1 // pred_check_branch
      %15 = sbr.rel (0) target = $region5
    $region4: #{tpu_custom_call.1} parent=1 // pred_region
      %s17 = ssub.s32 128, 128
      %18 = vsyncadd [#allocation3], %s17
      %s20 = sshll.u32 [#allocation2], 4
      %s21 = int_to_ptr.vmem [resolvable:$true] %s20
      %23 = dma.hbm_to_vmem [thread:$0]  %s0, 128, %s21, [#allocation3]
    $region5: #{tpu_custom_call.1} parent=1 // pred_fallthru
      _
    // Predicated region
    $region6: #{tpu_custom_call.1} parent=1 // pred_check
      _
    $region7: #{tpu_custom_call.1} parent=1 // pred_check_branch
      %25 = sbr.rel (0) target = $region9
    $region8: #{tpu_custom_call.1} parent=1 // pred_region
      _
    $region9: #{tpu_custom_call.1} parent=1 // pred_fallthru
      _
    // Predicated region
    $region10: #{tpu_custom_call.1} parent=1 // pred_check
      _
    $region11: #{tpu_custom_call.1} parent=1 // pred_check_branch
      %27 = sbr.rel (0) target = $region13
    $region12: #{tpu_custom_call.1} parent=1 // pred_region
      _
    $region13: #{tpu_custom_call.1} parent=1 // pred_fallthru
      _
    // Predicated region
    $region14: #{tpu_custom_call.1} parent=1 // pred_check
      _
    $region15: #{tpu_custom_call.1} parent=1 // pred_check_branch
      %29 = sbr.rel (0) target = $region17
    $region16: #{tpu_custom_call.1} parent=1 // pred_region
      _
    $region17: #{tpu_custom_call.1} parent=1 // pred_fallthru
      _
    // Predicated region
    $region18: #{tpu_custom_call.1} parent=1 // pred_check
      _
    $region19: #{tpu_custom_call.1} parent=1 // pred_check_branch
      %31 = sbr.rel (0) target = $region21
    $region20: #{tpu_custom_call.1} parent=1 // pred_region
      _
    $region21: #{tpu_custom_call.1} parent=1 // pred_fallthru
      _
    // Predicated region
    $region22: #{tpu_custom_call.1} parent=1 // pred_check
      _
    $region23: #{tpu_custom_call.1} parent=1 // pred_check_branch
      %33 = sbr.rel (0) target = $region25
    $region24: #{tpu_custom_call.1} parent=1 // pred_region
      _
    $region25: #{tpu_custom_call.1} parent=1 // pred_fallthru
      _
    // Predicated region
    $region26: #{tpu_custom_call.1} parent=1 // pred_check
      _
    $region27: #{tpu_custom_call.1} parent=1 // pred_check_branch
      %35 = sbr.rel (0) target = $region29
    $region28: #{tpu_custom_call.1} parent=1 // pred_region
      _
    $region29: #{tpu_custom_call.1} parent=1 // pred_fallthru
      _
    // Predicated region
    $region30: #{tpu_custom_call.1} parent=1 // pred_check
      _
    $region31: #{tpu_custom_call.1} parent=1 // pred_check_branch
      %37 = sbr.rel (0) target = $region33
    $region32: #{tpu_custom_call.1} parent=1 // pred_region
      %38 = dma.done [#allocation3], 128
    $region33: #{tpu_custom_call.1} parent=1 // pred_fallthru
      _
    %v39 = vld [vmem:[#allocation2] sm:$0xff]
    %v40 = vld [vmem:[%s1] sm:$0xff]
    %v41 = vld [vmem:[%s1 + $0x8] sm:$0xff]
    %v42 = vld [vmem:[%s2] sm:$0x1]
    %v44 = vlaneseq
    %v45 = vshrl.u32 %v44, 7
    %v46 = vsub.s32 0, %v45
    %v47 = vrot.slane %v42, %v46
    %vm49 = vcmask 130048
    %v51 = vsel %vm49, %v39, 0
    %53 = vmatprep.subr.mxu0 0.0
    %54 = vmatpush1.msra.mxu0 %v40
    %55 = vmatprep.subr.mxu0 0.0
    %56 = vmatpush1.msra.mxu0 %v41
    %57 = vmatprep.subr.mxu0 0.0
    %58 = vmatpush1.msra.mxu0 0.0
    %59 = vmatprep.subr.mxu0 0.0
    %60 = vmatpush1.msra.mxu0 0.0
    %61 = vmatprep.subr.mxu0 0.0
    %62 = vmatpush1.msra.mxu0 0.0
    %63 = vmatprep.subr.mxu0 0.0
    %64 = vmatpush1.msra.mxu0 0.0
    %65 = vmatprep.subr.mxu0 0.0
    %66 = vmatpush1.msra.mxu0 0.0
    %67 = vmatprep.subr.mxu0 0.0
    %68 = vmatpush1.msra.mxu0 0.0
    %69 = vmatprep.subr.mxu0 0.0
    %70 = vmatpush1.msra.mxu0 0.0
    %71 = vmatprep.subr.mxu0 0.0
    %72 = vmatpush1.msra.mxu0 0.0
    %73 = vmatprep.subr.mxu0 0.0
    %74 = vmatpush1.msra.mxu0 0.0
    %75 = vmatprep.subr.mxu0 0.0
    %76 = vmatpush1.msra.mxu0 0.0
    %77 = vmatprep.subr.mxu0 0.0
    %78 = vmatpush1.msra.mxu0 0.0
    %79 = vmatprep.subr.mxu0 0.0
    %80 = vmatpush1.msra.mxu0 0.0
    %81 = vmatprep.subr.mxu0 0.0
    %82 = vmatpush1.msra.mxu0 0.0
    %83 = vmatprep.subr.mxu0 0.0
    %84 = vmatpush1.msra.mxu0 0.0
    %85 = vmatprep.subr.mxu0 0.0
    %86 = vmatpush1.msra.mxu0 0.0
    %87 = vmatprep.subr.mxu0 0.0
    %88 = vmatpush1.msra.mxu0 0.0
    %89 = vmatprep.subr.mxu0 0.0
    %90 = vmatpush1.msra.mxu0 0.0
    %91 = vmatprep.subr.mxu0 0.0
    %92 = vmatpush1.msra.mxu0 0.0
    %93 = vmatprep.subr.mxu0 0.0
    %94 = vmatpush1.msra.mxu0 0.0
    %95 = vmatprep.subr.mxu0 0.0
    %96 = vmatpush1.msra.mxu0 0.0
    %97 = vmatprep.subr.mxu0 0.0
    %98 = vmatpush1.msra.mxu0 0.0
    %99 = vmatprep.subr.mxu0 0.0
    %100 = vmatpush1.msra.mxu0 0.0
    %101 = vmatprep.subr.mxu0 0.0
    %102 = vmatpush1.msra.mxu0 0.0
    %103 = vmatprep.subr.mxu0 0.0
    %104 = vmatpush1.msra.mxu0 0.0
    %105 = vmatprep.subr.mxu0 0.0
    %106 = vmatpush1.msra.mxu0 0.0
    %107 = vmatprep.subr.mxu0 0.0
    %108 = vmatpush1.msra.mxu0 0.0
    %109 = vmatprep.subr.mxu0 0.0
    %110 = vmatpush1.msra.mxu0 0.0
    %111 = vmatprep.subr.mxu0 0.0
    %112 = vmatpush1.msra.mxu0 0.0
    %113 = vmatprep.subr.mxu0 0.0
    %114 = vmatpush1.msra.mxu0 0.0
    %115 = vmatprep.subr.mxu0 0.0
    %116 = vmatpush1.msra.mxu0 0.0
    %117 = vmatprep.mubr.f32.mxu0 0.0
    %118 = vmatmul.mubr.f32.gmra.mrb[0].mxu0 %v51
    %v119 = vpop.f32.mrb[0].mxu0
    %v120 = vadd.f32 %v47, %v119
    %v121 = vpop.f32.mrb[0].mxu0
    %122 = vdwg.mxu0
    %v123 = vmax.f32 %v120, 0.0
    %v124 = vld [vmem:[%s3] sm:$0xff]
    %v125 = vld [vmem:[%s3 + $0x8] sm:$0xff]
    %v126 = vld [vmem:[%s3 + $0x10] sm:$0xff]
    %v127 = vld [vmem:[%s3 + $0x18] sm:$0xff]
    %v128 = vld [vmem:[%s3 + $0x20] sm:$0xff]
    %v129 = vld [vmem:[%s3 + $0x28] sm:$0xff]
    %v130 = vld [vmem:[%s3 + $0x30] sm:$0xff]
    %v131 = vld [vmem:[%s3 + $0x38] sm:$0xff]
    %v132 = vld [vmem:[%s3 + $0x40] sm:$0xff]
    %v133 = vld [vmem:[%s3 + $0x48] sm:$0xff]
    %v134 = vld [vmem:[%s3 + $0x50] sm:$0xff]
    %v135 = vld [vmem:[%s3 + $0x58] sm:$0xff]
    %v136 = vld [vmem:[%s3 + $0x60] sm:$0xff]
    %v137 = vld [vmem:[%s3 + $0x68] sm:$0xff]
    %v138 = vld [vmem:[%s3 + $0x70] sm:$0xff]
    %v139 = vld [vmem:[%s3 + $0x78] sm:$0xff]
    %v140 = vld [vmem:[%s4] sm:$0x1]
    %v142 = vlaneseq
    %v143 = vshrl.u32 %v142, 7
    %v144 = vsub.s32 0, %v143
    %v145 = vrot.slane %v140, %v144
    %147 = vmatprep.subr.mxu0 0.0
    %148 = vmatpush1.msra.mxu0 %v124
    %149 = vmatprep.subr.mxu0 0.0
    %150 = vmatpush1.msra.mxu0 %v125
    %151 = vmatprep.subr.mxu0 0.0
    %152 = vmatpush1.msra.mxu0 %v126
    %153 = vmatprep.subr.mxu0 0.0
    %154 = vmatpush1.msra.mxu0 %v127
    %155 = vmatprep.subr.mxu0 0.0
    %156 = vmatpush1.msra.mxu0 %v128
    %157 = vmatprep.subr.mxu0 0.0
    %158 = vmatpush1.msra.mxu0 %v129
    %159 = vmatprep.subr.mxu0 0.0
    %160 = vmatpush1.msra.mxu0 %v130
    %161 = vmatprep.subr.mxu0 0.0
    %162 = vmatpush1.msra.mxu0 %v131
    %163 = vmatprep.subr.mxu0 0.0
    %164 = vmatpush1.msra.mxu0 %v132
    %165 = vmatprep.subr.mxu0 0.0
    %166 = vmatpush1.msra.mxu0 %v133
    %167 = vmatprep.subr.mxu0 0.0
    %168 = vmatpush1.msra.mxu0 %v134
    %169 = vmatprep.subr.mxu0 0.0
    %170 = vmatpush1.msra.mxu0 %v135
    %171 = vmatprep.subr.mxu0 0.0
    %172 = vmatpush1.msra.mxu0 %v136
    %173 = vmatprep.subr.mxu0 0.0
    %174 = vmatpush1.msra.mxu0 %v137
    %175 = vmatprep.subr.mxu0 0.0
    %176 = vmatpush1.msra.mxu0 %v138
    %177 = vmatprep.subr.mxu0 0.0
    %178 = vmatpush1.msra.mxu0 %v139
    %179 = vmatprep.subr.mxu0 0.0
    %180 = vmatpush1.msra.mxu0 0.0
    %181 = vmatprep.subr.mxu0 0.0
    %182 = vmatpush1.msra.mxu0 0.0
    %183 = vmatprep.subr.mxu0 0.0
    %184 = vmatpush1.msra.mxu0 0.0
    %185 = vmatprep.subr.mxu0 0.0
    %186 = vmatpush1.msra.mxu0 0.0
    %187 = vmatprep.subr.mxu0 0.0
    %188 = vmatpush1.msra.mxu0 0.0
    %189 = vmatprep.subr.mxu0 0.0
    %190 = vmatpush1.msra.mxu0 0.0
    %191 = vmatprep.subr.mxu0 0.0
    %192 = vmatpush1.msra.mxu0 0.0
    %193 = vmatprep.subr.mxu0 0.0
    %194 = vmatpush1.msra.mxu0 0.0
    %195 = vmatprep.subr.mxu0 0.0
    %196 = vmatpush1.msra.mxu0 0.0
    %197 = vmatprep.subr.mxu0 0.0
    %198 = vmatpush1.msra.mxu0 0.0
    %199 = vmatprep.subr.mxu0 0.0
    %200 = vmatpush1.msra.mxu0 0.0
    %201 = vmatprep.subr.mxu0 0.0
    %202 = vmatpush1.msra.mxu0 0.0
    %203 = vmatprep.subr.mxu0 0.0
    %204 = vmatpush1.msra.mxu0 0.0
    %205 = vmatprep.subr.mxu0 0.0
    %206 = vmatpush1.msra.mxu0 0.0
    %207 = vmatprep.subr.mxu0 0.0
    %208 = vmatpush1.msra.mxu0 0.0
    %209 = vmatprep.subr.mxu0 0.0
    %210 = vmatpush1.msra.mxu0 0.0
    %211 = vmatprep.mubr.f32.mxu0 0.0
    %212 = vmatmul.mubr.f32.gmra.mrb[0].mxu0 %v123
    %v213 = vpop.f32.mrb[0].mxu0
    %v214 = vadd.f32 %v145, %v213
    %v215 = vpop.f32.mrb[0].mxu0
    %216 = vdwg.mxu0
    %v217 = vmax.f32 %v214, 0.0
    %v218 = vld [vmem:[%s5] sm:$0xff]
    %v219 = vld [vmem:[%s5 + $0x8] sm:$0xff]
    %v220 = vld [vmem:[%s5 + $0x10] sm:$0xff]
    %v221 = vld [vmem:[%s5 + $0x18] sm:$0xff]
    %v222 = vld [vmem:[%s5 + $0x20] sm:$0xff]
    %v223 = vld [vmem:[%s5 + $0x28] sm:$0xff]
    %v224 = vld [vmem:[%s5 + $0x30] sm:$0xff]
    %v225 = vld [vmem:[%s5 + $0x38] sm:$0xff]
    %v226 = vld [vmem:[%s5 + $0x40] sm:$0xff]
    %v227 = vld [vmem:[%s5 + $0x48] sm:$0xff]
    %v228 = vld [vmem:[%s5 + $0x50] sm:$0xff]
    %v229 = vld [vmem:[%s5 + $0x58] sm:$0xff]
    %v230 = vld [vmem:[%s5 + $0x60] sm:$0xff]
    %v231 = vld [vmem:[%s5 + $0x68] sm:$0xff]
    %v232 = vld [vmem:[%s5 + $0x70] sm:$0xff]
    %v233 = vld [vmem:[%s5 + $0x78] sm:$0xff]
    %v234 = vld [vmem:[%s6] sm:$0x1]
    %v236 = vlaneseq
    %v237 = vshrl.u32 %v236, 7
    %v238 = vsub.s32 0, %v237
    %v239 = vrot.slane %v234, %v238
    %241 = vmatprep.subr.mxu0 0.0
    %242 = vmatpush1.msra.mxu0 %v218
    %243 = vmatprep.subr.mxu0 0.0
    %244 = vmatpush1.msra.mxu0 %v219
    %245 = vmatprep.subr.mxu0 0.0
    %246 = vmatpush1.msra.mxu0 %v220
    %247 = vmatprep.subr.mxu0 0.0
    %248 = vmatpush1.msra.mxu0 %v221
    %249 = vmatprep.subr.mxu0 0.0
    %250 = vmatpush1.msra.mxu0 %v222
    %251 = vmatprep.subr.mxu0 0.0
    %252 = vmatpush1.msra.mxu0 %v223
    %253 = vmatprep.subr.mxu0 0.0
    %254 = vmatpush1.msra.mxu0 %v224
    %255 = vmatprep.subr.mxu0 0.0
    %256 = vmatpush1.msra.mxu0 %v225
    %257 = vmatprep.subr.mxu0 0.0
    %258 = vmatpush1.msra.mxu0 %v226
    %259 = vmatprep.subr.mxu0 0.0
    %260 = vmatpush1.msra.mxu0 %v227
    %261 = vmatprep.subr.mxu0 0.0
    %262 = vmatpush1.msra.mxu0 %v228
    %263 = vmatprep.subr.mxu0 0.0
    %264 = vmatpush1.msra.mxu0 %v229
    %265 = vmatprep.subr.mxu0 0.0
    %266 = vmatpush1.msra.mxu0 %v230
    %267 = vmatprep.subr.mxu0 0.0
    %268 = vmatpush1.msra.mxu0 %v231
    %269 = vmatprep.subr.mxu0 0.0
    %270 = vmatpush1.msra.mxu0 %v232
    %271 = vmatprep.subr.mxu0 0.0
    %272 = vmatpush1.msra.mxu0 %v233
    %273 = vmatprep.subr.mxu0 0.0
    %274 = vmatpush1.msra.mxu0 0.0
    %275 = vmatprep.subr.mxu0 0.0
    %276 = vmatpush1.msra.mxu0 0.0
    %277 = vmatprep.subr.mxu0 0.0
    %278 = vmatpush1.msra.mxu0 0.0
    %279 = vmatprep.subr.mxu0 0.0
    %280 = vmatpush1.msra.mxu0 0.0
    %281 = vmatprep.subr.mxu0 0.0
    %282 = vmatpush1.msra.mxu0 0.0
    %283 = vmatprep.subr.mxu0 0.0
    %284 = vmatpush1.msra.mxu0 0.0
    %285 = vmatprep.subr.mxu0 0.0
    %286 = vmatpush1.msra.mxu0 0.0
    %287 = vmatprep.subr.mxu0 0.0
    %288 = vmatpush1.msra.mxu0 0.0
    %289 = vmatprep.subr.mxu0 0.0
    %290 = vmatpush1.msra.mxu0 0.0
    %291 = vmatprep.subr.mxu0 0.0
    %292 = vmatpush1.msra.mxu0 0.0
    %293 = vmatprep.subr.mxu0 0.0
    %294 = vmatpush1.msra.mxu0 0.0
    %295 = vmatprep.subr.mxu0 0.0
    %296 = vmatpush1.msra.mxu0 0.0
    %297 = vmatprep.subr.mxu0 0.0
    %298 = vmatpush1.msra.mxu0 0.0
    %299 = vmatprep.subr.mxu0 0.0
    %300 = vmatpush1.msra.mxu0 0.0
    %301 = vmatprep.subr.mxu0 0.0
    %302 = vmatpush1.msra.mxu0 0.0
    %303 = vmatprep.subr.mxu0 0.0
    %304 = vmatpush1.msra.mxu0 0.0
    %305 = vmatprep.mubr.f32.mxu0 0.0
    %306 = vmatmul.mubr.f32.gmra.mrb[0].mxu0 %v217
    %v307 = vpop.f32.mrb[0].mxu0
    %v308 = vadd.f32 %v239, %v307
    %v309 = vpop.f32.mrb[0].mxu0
    %310 = vdwg.mxu0
    %vm311 = vcmask 64512
    %312 = vst.msk [vmem:[#allocation5] sm:$0xff] %vm311, %v308
    // Predicated region
    $region34: #{tpu_custom_call.1} parent=1 // pred_check
      _
    $region35: #{tpu_custom_call.1} parent=1 // pred_check_branch
      %314 = sbr.rel (0) target = $region37
    $region36: #{tpu_custom_call.1} parent=1 // pred_region
      %s316 = ssub.s32 128, 128
      %317 = vsyncadd [#allocation4], %s316
      %s319 = sshll.u32 [#allocation5], 4
      %s320 = int_to_ptr.vmem [resolvable:$true] %s319
      %322 = dma.vmem_to_hbm [thread:$0]  %s320, 128, %s7, [#allocation4]
    $region37: #{tpu_custom_call.1} parent=1 // pred_fallthru
      _
    // Predicated region
    $region38: #{tpu_custom_call.1} parent=1 // pred_check
      _
    $region39: #{tpu_custom_call.1} parent=1 // pred_check_branch
      %324 = sbr.rel (0) target = $region41
    $region40: #{tpu_custom_call.1} parent=1 // pred_region
      %325 = dma.done [#allocation4], 128
    $region41: #{tpu_custom_call.1} parent=1 // pred_fallthru
      _
    %326 = vsyncpa [#allocation3], 1
    %327 = vsyncpa [#allocation4], 1

</llo_original>
